<compile_context>
chip_gen: v7x
topology: tpu7x:2x2x1
jax: 0.10.0
libtpu: 0.0.40
codegen_flags: <defaults>
</compile_context>

<pallas_src>
import functools
import math

import jax
import jax.numpy as jnp
import numpy as np
from jax import lax
from jax.experimental import pallas as pl
from jax.experimental.pallas import tpu as pltpu

_NEG_INF = -1e30


@functools.lru_cache(maxsize=None)
def _vmem_limit_bytes():
    # ~3/4 of physical VMEM, capped at 100 MiB:
    #   v5e/v6e (128 MiB physical) -> 96 MiB ; v7x (64 MiB physical) -> 48 MiB.
    try:
        cap = int(pltpu.get_tpu_info().vmem_capacity_bytes)
    except Exception:
        cap = 128 * 1024 * 1024
    return int(min(100 * 1024 * 1024, (cap * 3) // 4))


def _pad_rows(x, n_padded):
    n = x.shape[0]
    if n == n_padded:
        return x
    return jnp.pad(x, ((0, n_padded - n),) + ((0, 0),) * (x.ndim - 1))


# ----------------------------------------------------------------------------
# Kernel 1: dense linear layer  y = x @ W + b   (row- and column-tiled)
# ----------------------------------------------------------------------------
def _linear_kernel(x_ref, w_ref, b_ref, o_ref):
    acc = jnp.dot(x_ref[...], w_ref[...], preferred_element_type=jnp.float32)
    o_ref[...] = (acc + b_ref[...]).astype(o_ref.dtype)


def linear_pallas(x, w, b, *, tile_rows=512, tile_cols=512,
                  out_dtype=jnp.float32):
    """x: (N, d_in), w: (d_in, d_out), b: (1, d_out) f32 -> (N, d_out)."""
    N, d_in = x.shape
    d_out = w.shape[1]
    tn = min(tile_rows, N)
    tc = min(tile_cols, d_out)
    n_pad = pl.cdiv(N, tn) * tn
    c_pad = pl.cdiv(d_out, tc) * tc
    xp = _pad_rows(x, n_pad)
    wp = w if c_pad == d_out else jnp.pad(w, ((0, 0), (0, c_pad - d_out)))
    bp = b if c_pad == d_out else jnp.pad(b, ((0, 0), (0, c_pad - d_out)))

    cost = pl.CostEstimate(
        flops=2 * N * d_in * d_out,
        transcendentals=0,
        bytes_accessed=int(x.dtype.itemsize) * N * d_in
        + int(w.dtype.itemsize) * d_in * d_out
        + 4 * d_out
        + int(jnp.dtype(out_dtype).itemsize) * N * d_out,
    )

    y = pl.pallas_call(
        _linear_kernel,
        out_shape=jax.ShapeDtypeStruct((n_pad, c_pad), out_dtype),
        grid=(n_pad // tn, c_pad // tc),
        in_specs=[
            pl.BlockSpec((tn, d_in), lambda i, j: (i, 0)),
            pl.BlockSpec((d_in, tc), lambda i, j: (0, j)),
            pl.BlockSpec((1, tc), lambda i, j: (0, j)),
        ],
        out_specs=pl.BlockSpec((tn, tc), lambda i, j: (i, j)),
        compiler_params=pltpu.CompilerParams(
            dimension_semantics=("parallel", "parallel"),
            vmem_limit_bytes=_vmem_limit_bytes(),
        ),
        cost_estimate=cost,
    )(xp, wp, bp)
    return y[:N, :d_out]


# ----------------------------------------------------------------------------
# Kernel 2: HGT masked attention, flash-style over src tiles, block-skip
# ----------------------------------------------------------------------------
def _hgt_attn_kernel(occ_ref, q_ref, kv_ref, adj_ref, o_ref,
                     m_sc, l_sc, acc_sc, *, num_heads, d_k, out_dim):
    di = pl.program_id(0)
    sj = pl.program_id(1)
    td = q_ref.shape[0]

    @pl.when(sj == 0)
    def _init():
        m_sc[...] = jnp.full_like(m_sc, _NEG_INF)
        l_sc[...] = jnp.zeros_like(l_sc)
        acc_sc[...] = jnp.zeros_like(acc_sc)

    @pl.when(occ_ref[di, sj] != 0)          # skip fully-masked blocks entirely
    def _compute():
        mask = adj_ref[...] != 0             # (td, ts) bool, multi-edge safe
        q = q_ref[...]                       # (td, out_dim)
        kv = kv_ref[...]                     # (ts, 2*out_dim)
        k = kv[:, :out_dim]                  # W_att & mu/sqrt(d_k) folded in
        v = kv[:, out_dim:]                  # W_msg folded in

        alphas, pv_cols = [], []
        for h in range(num_heads):           # static unroll; num_heads is small
            c0 = h * d_k
            qh = q[:, c0:c0 + d_k]
            kh = k[:, c0:c0 + d_k]
            vh = v[:, c0:c0 + d_k]
            s = lax.dot_general(qh, kh, (((1,), (1,)), ((), ())),
                                preferred_element_type=jnp.float32)   # (td, ts)
            s = jnp.where(mask, s, _NEG_INF)
            m_prev = m_sc[h]                                          # (td, 1)
            m_new = jnp.maximum(m_prev, jnp.max(s, axis=-1, keepdims=True))
            alpha = jnp.exp(m_prev - m_new)                           # (td, 1)
            p = jnp.where(mask, jnp.exp(s - m_new), 0.0)              # f32
            l_sc[h] = alpha * l_sc[h] + jnp.sum(p, axis=-1, keepdims=True)
            m_sc[h] = m_new
            pv_cols.append(jnp.dot(p.astype(vh.dtype), vh,
                                   preferred_element_type=jnp.float32))
            alphas.append(jnp.broadcast_to(alpha, (td, d_k)))

        # single lane-dense (td, out_dim) accumulator update per src block
        acc_sc[...] = (jnp.concatenate(alphas, axis=-1) * acc_sc[...]
                       + jnp.concatenate(pv_cols, axis=-1))

    @pl.when(sj == pl.num_programs(1) - 1)
    def _finalize():
        scale_cols = []
        for h in range(num_heads):
            denom = l_sc[h]                                           # (td, 1)
            safe = jnp.where(denom > 0.0, denom, 1.0)
            inv = jnp.where(denom > 0.0, 1.0 / safe, 0.0)  # zero-in-degree -> 0
            scale_cols.append(jnp.broadcast_to(inv, (td, d_k)))
        # single full-width output store
        o_ref[...] = (acc_sc[...] * jnp.concatenate(scale_cols, axis=-1)
                      ).astype(o_ref.dtype)


def hgt_attn_pallas(q, kv, adj, *, num_heads, d_k, out_dim,
                    tile_dst=256, tile_src=512):
    """
    q   : (N_dst, out_dim)     query projection
    kv  : (N_src, 2*out_dim)   [k with W_att*mu/sqrt(d_k) folded | v with W_msg folded]
    adj : (N_dst, N_src) int8  adj[d, s] != 0 iff edge s -> d
    returns (N_dst, out_dim) float32
    """
    N_dst = q.shape[0]
    N_src = kv.shape[0]
    td = min(tile_dst, N_dst)
    ts = min(tile_src, N_src)
    nd_pad = pl.cdiv(N_dst, td) * td
    ns_pad = pl.cdiv(N_src, ts) * ts
    qp = _pad_rows(q, nd_pad)
    kvp = _pad_rows(kv, ns_pad)
    adjp = adj
    if nd_pad != N_dst or ns_pad != N_src:
        adjp = jnp.pad(adj, ((0, nd_pad - N_dst), (0, ns_pad - N_src)))

    nd_blk = nd_pad // td
    ns_blk = ns_pad // ts
    # per-(dst-tile, src-tile) occupancy table: lets the kernel skip blocks
    # with no edges (graph adjacencies are typically sparse).
    occ = jnp.any(adjp.reshape(nd_blk, td, ns_blk, ts) != 0,
                  axis=(1, 3)).astype(jnp.int32)

    kernel = functools.partial(
        _hgt_attn_kernel, num_heads=num_heads, d_k=d_k, out_dim=out_dim)

    nnz = N_dst * N_src  # dense upper bound
    cost = pl.CostEstimate(
        flops=num_heads * (4 * nnz * d_k + 6 * nnz),
        transcendentals=num_heads * nnz,
        bytes_accessed=int(q.dtype.itemsize) * q.size
        + int(kv.dtype.itemsize) * kv.size
        + adj.size + 4 * N_dst * out_dim,
    )

    grid_spec = pltpu.PrefetchScalarGridSpec(
        num_scalar_prefetch=1,
        grid=(nd_blk, ns_blk),
        in_specs=[
            pl.BlockSpec((td, out_dim), lambda i, j, _occ: (i, 0)),      # q
            pl.BlockSpec((ts, 2 * out_dim), lambda i, j, _occ: (j, 0)),  # kv tile
            pl.BlockSpec((td, ts), lambda i, j, _occ: (i, j)),           # adj tile
        ],
        out_specs=pl.BlockSpec((td, out_dim), lambda i, j, _occ: (i, 0)),
        scratch_shapes=[
            pltpu.VMEM((num_heads, td, 1), jnp.float32),   # running max  m
            pltpu.VMEM((num_heads, td, 1), jnp.float32),   # running sum  l
            pltpu.VMEM((td, out_dim), jnp.float32),        # output accumulator
        ],
    )

    out = pl.pallas_call(
        kernel,
        out_shape=jax.ShapeDtypeStruct((nd_pad, out_dim), jnp.float32),
        grid_spec=grid_spec,
        compiler_params=pltpu.CompilerParams(
            dimension_semantics=("parallel", "arbitrary"),
            vmem_limit_bytes=_vmem_limit_bytes(),
        ),
        cost_estimate=cost,
    )(occ, qp, kvp, adjp)
    return out[:N_dst]


# ----------------------------------------------------------------------------
# Full HGTAttention forward
# ----------------------------------------------------------------------------
def hgt_attention_forward(feat_src, feat_dst, adj, params, num_heads,
                          compute_dtype=jnp.float32):
    out_dim = params["wq"].shape[1]
    d_k = out_dim // num_heads
    d_in = feat_src.shape[1]

    # Fold relation transforms (and mu / sqrt(d_k)) into projection weights:
    #   kh = ((x @ Wk + bk) @ W_att) * mu/sqrt(dk)  ==  x @ Wk_f + bk_f
    #   vh =  (x @ Wv + bv) @ W_msg                 ==  x @ Wv_f + bv_f
    scale = params["mu"][0] / math.sqrt(d_k)
    w_att_s = params["w_att"] * scale                          # (H, d_k, d_k)
    wk = params["wk"].reshape(d_in, num_heads, d_k)
    wv = params["wv"].reshape(d_in, num_heads, d_k)
    bk = params["bk"].reshape(num_heads, d_k)
    bv = params["bv"].reshape(num_heads, d_k)
    wk_f = jnp.einsum("dhi,hij->dhj", wk, w_att_s).reshape(d_in, out_dim)
    bk_f = jnp.einsum("hi,hij->hj", bk, w_att_s).reshape(1, out_dim)
    wv_f = jnp.einsum("dhi,hij->dhj", wv, params["w_msg"]).reshape(d_in, out_dim)
    bv_f = jnp.einsum("hi,hij->hj", bv, params["w_msg"]).reshape(1, out_dim)

    w_kv = jnp.concatenate([wk_f, wv_f], axis=1).astype(compute_dtype)
    b_kv = jnp.concatenate([bk_f, bv_f], axis=1).astype(jnp.float32)

    xs = feat_src.astype(compute_dtype)
    xd = feat_dst.astype(compute_dtype)
    wq = params["wq"].astype(compute_dtype)
    bq = params["bq"].astype(jnp.float32)

    # fused projections (row/column-tiled Pallas matmuls)
    kv = linear_pallas(xs, w_kv, b_kv, out_dtype=compute_dtype)   # (N_src, 2*out_dim)
    q = linear_pallas(xd, wq, bq, out_dtype=compute_dtype)        # (N_dst, out_dim)

    # always rebinarize: adjacency may carry multi-edge counts
    adj_i8 = (adj != 0).astype(jnp.int8)

    return hgt_attn_pallas(q, kv, adj_i8, num_heads=num_heads, d_k=d_k,
                           out_dim=out_dim)


# ----------------------------------------------------------------------------
# Pure-JAX reference for verification
# ----------------------------------------------------------------------------
def hgt_attention_reference(feat_src, feat_dst, adj, params, num_heads):
    out_dim = params["wq"].shape[1]
    d_k = out_dim // num_heads
    k = (feat_src @ params["wk"] + params["bk"]).reshape(-1, num_heads, d_k)
    v = (feat_src @ params["wv"] + params["bv"]).reshape(-1, num_heads, d_k)
    q = (feat_dst @ params["wq"] + params["bq"]).reshape(-1, num_heads, d_k)
    k = jnp.einsum("nhi,hij->nhj", k, params["w_att"])
    v = jnp.einsum("nhi,hij->nhj", v, params["w_msg"])
    scores = jnp.einsum("dhi,shi->dhs", q, k) * params["mu"][0] / math.sqrt(d_k)
    mask = (adj != 0)[:, None, :]                      # (N_dst, 1, N_src)
    masked = jnp.where(mask, scores, -1e30)
    row_max = jnp.max(masked, axis=-1, keepdims=True)
    p = jnp.where(mask, jnp.exp(masked - row_max), 0.0)
    denom = jnp.sum(p, axis=-1, keepdims=True)
    attn = p / jnp.where(denom > 0, denom, 1.0)
    out = jnp.einsum("dhs,shj->dhj", attn, v)
    return out.reshape(-1, out_dim)


if __name__ == "__main__":
    # small shapes consistent with the module
    N_src, N_dst = 16, 8
    d_in = 16
    out_dim = 32
    num_heads = 4
    d_k = out_dim // num_heads

    key = jax.random.PRNGKey(0)
    keys = jax.random.split(key, 12)

    feat_src = jax.random.normal(keys[0], (N_src, d_in), jnp.float32)
    feat_dst = jax.random.normal(keys[1], (N_dst, d_in), jnp.float32)
    # dense bipartite adjacency mask: adj[d, s] = 1 iff edge s -> d
    adj = jax.random.bernoulli(keys[2], 0.5, (N_dst, N_src)).astype(jnp.float32)
    adj = adj.at[3].set(0.0)   # exercise a zero-in-degree destination node

    params = {
        "wk": 0.1 * jax.random.normal(keys[3], (d_in, out_dim), jnp.float32),
        "bk": 0.1 * jax.random.normal(keys[4], (1, out_dim), jnp.float32),
        "wq": 0.1 * jax.random.normal(keys[5], (d_in, out_dim), jnp.float32),
        "bq": 0.1 * jax.random.normal(keys[6], (1, out_dim), jnp.float32),
        "wv": 0.1 * jax.random.normal(keys[7], (d_in, out_dim), jnp.float32),
        "bv": 0.1 * jax.random.normal(keys[8], (1, out_dim), jnp.float32),
        "w_att": 0.1 * jax.random.normal(keys[9], (num_heads, d_k, d_k), jnp.float32),
        "w_msg": 0.1 * jax.random.normal(keys[10], (num_heads, d_k, d_k), jnp.float32),
        "mu": jnp.ones((1,), jnp.float32),
    }

    ref = hgt_attention_reference(feat_src, feat_dst, adj, params, num_heads)

    # f32 compute path (tight tolerance; exact softmax division)
    out_f32 = jax.block_until_ready(
        hgt_attention_forward(feat_src, feat_dst, adj, params, num_heads,
                              compute_dtype=jnp.float32))
    np.testing.assert_allclose(np.asarray(out_f32), np.asarray(ref),
                               rtol=1e-3, atol=1e-4)
    assert out_f32.shape == (N_dst, out_dim)

    # bf16 matmul-input path (softmax stats / accumulation stay f32)
    out_bf16 = jax.block_until_ready(
        hgt_attention_forward(feat_src, feat_dst, adj, params, num_heads,
                              compute_dtype=jnp.bfloat16))
    np.testing.assert_allclose(np.asarray(out_bf16), np.asarray(ref),
                               rtol=5e-2, atol=3e-2)

    print("KERNEL_OK")
</pallas_src>

<mosaic_0001>
module attributes {stable_mosaic.version = 11 : i64} {
  func.func @_linear_kernel(%arg0: i32, %arg1: i32, %arg2: memref<16x16xf32, #tpu.memory_space<vmem>>, %arg3: memref<16x64xf32, #tpu.memory_space<vmem>>, %arg4: memref<1x64xf32, #tpu.memory_space<vmem>>, %arg5: memref<16x64xf32, #tpu.memory_space<vmem>>) attributes {dimension_semantics = [#tpu.dimension_semantics<parallel>, #tpu.dimension_semantics<parallel>], iteration_bounds = array<i64: 1, 1>, scalar_prefetch = 0 : i64, scratch_operands = 0 : i64, tpu.core_type = #tpu.core_type<tc>, window_params = [{transform_indices = @transform_0, window_bounds = array<i64: 16, 16>}, {transform_indices = @transform_1, window_bounds = array<i64: 16, 64>}, {transform_indices = @transform_2, window_bounds = array<i64: 1, 64>}, {transform_indices = @transform_3, window_bounds = array<i64: 16, 64>}]} {
    %c0 = arith.constant 0 : index
    %c0_0 = arith.constant 0 : index
    %0 = vector.load %arg2[%c0, %c0_0] : memref<16x16xf32, #tpu.memory_space<vmem>>, vector<16x16xf32>
    %c0_1 = arith.constant 0 : index
    %c0_2 = arith.constant 0 : index
    %1 = vector.load %arg3[%c0_1, %c0_2] : memref<16x64xf32, #tpu.memory_space<vmem>>, vector<16x64xf32>
    %cst = arith.constant dense<0.000000e+00> : vector<16x64xf32>
    %2 = tpu.matmul %0, %1, %cst {dimension_numbers = #tpu.dot_dimension_numbers<[1], [0], [0], [1], [0, 0, 1, 1], [], []>} : vector<16x16xf32>, vector<16x64xf32>, vector<16x64xf32> -> vector<16x64xf32>
    %c0_3 = arith.constant 0 : index
    %c0_4 = arith.constant 0 : index
    %3 = vector.load %arg4[%c0_3, %c0_4] : memref<1x64xf32, #tpu.memory_space<vmem>>, vector<1x64xf32>
    %4 = vector.broadcast %3 : vector<1x64xf32> to vector<16x64xf32>
    %5 = arith.addf %2, %4 : vector<16x64xf32>
    %c0_5 = arith.constant 0 : index
    %c0_6 = arith.constant 0 : index
    %6 = vector.load %arg5[%c0_5, %c0_6] : memref<16x64xf32, #tpu.memory_space<vmem>>, vector<16x64xf32>
    tpu.vector_store %arg5[%c0_5, %c0_6], %5 {strides = array<i32>} : memref<16x64xf32, #tpu.memory_space<vmem>>, vector<16x64xf32>,
    return
  }
  func.func @transform_0(%arg0: i32, %arg1: i32) -> (i32, i32) {
    %c0_i32 = arith.constant 0 : i32
    %c0_i32_0 = arith.constant 0 : i32
    return %arg0, %c0_i32 : i32, i32
  }
  func.func @transform_1(%arg0: i32, %arg1: i32) -> (i32, i32) {
    %c0_i32 = arith.constant 0 : i32
    %c0_i32_0 = arith.constant 0 : i32
    return %c0_i32, %arg1 : i32, i32
  }
  func.func @transform_2(%arg0: i32, %arg1: i32) -> (i32, i32) {
    %c0_i32 = arith.constant 0 : i32
    %c0_i32_0 = arith.constant 0 : i32
    return %c0_i32, %arg1 : i32, i32
  }
  func.func @transform_3(%arg0: i32, %arg1: i32) -> (i32, i32) {
    %c0_i32 = arith.constant 0 : i32
    return %arg0, %arg1 : i32, i32
  }
}

</mosaic_0001>

<llo_original>
// kernel: tpu_custom_call.1
$region0: #{tpu_custom_call.1}
  #allocation0 [shape = 'u32[]', space=smem, size = 0x4, offset = 0x4, fixed_abs, tag = 'smem constant byte address 0x4 - core index']
  #allocation1 [shape = 'u32[144,128]{1,0:T(1,128)}', space=vmem, size = 0x12000, scoped, tag = 'internal scratch']
  %s0 = inlined_call_operand.hbm [shape: f32[16,16], index: 0, kind: input, shape index: {}]
  %s1 = inlined_call_operand.hbm [shape: f32[16,64], index: 1, kind: input, shape index: {}]
  %s2 = inlined_call_operand.hbm [shape: f32[1,64], index: 2, kind: input, shape index: {}]
  %s3 = inlined_call_operand.hbm [shape: f32[16,64], index: 3, kind: output, shape index: {}]
  %s4 = sld [smem:[#allocation0]]
  $region34: #{tpu_custom_call.1} parent=0
    _
  %s6 = ssub.s32 1, %s4
  %s7 = scalar_select 0, %s6, %s4
  $region1: #{tpu_custom_call.1} parent=0
    #allocation2 [shape = 'u8[8192]{0}', space=vmem, size = 0x2000, scoped, tag = 'input window, operand 0, single buffered']
    #allocation3 [shape = 's32[1]{0}', space=sflag, size = 0x4, scoped, tag = 'scoped memory for tpu_custom_call.1']
    #allocation4 [shape = 's32[1]{0}', space=sflag, size = 0x4, scoped, tag = 'scoped memory for tpu_custom_call.1']
    #allocation5 [shape = 'u8[8192]{0}', space=vmem, size = 0x2000, scoped, tag = 'input window, operand 1, single buffered']
    #allocation6 [shape = 's32[1]{0}', space=sflag, size = 0x4, scoped, tag = 'scoped memory for tpu_custom_call.1']
    #allocation7 [shape = 'u8[512]{0}', space=vmem, size = 0x400, scoped, tag = 'input window, operand 2, single buffered']
    #allocation8 [shape = 'u8[8192]{0}', space=vmem, size = 0x2000, scoped, tag = 'output window, operand 0, single buffered']
    %8 = vsyncpa [#allocation3], 0
    %9 = vsyncpa [#allocation6], 0
    %10 = vsyncpa [#allocation4], 0
    // Predicated region
    $region2: #{tpu_custom_call.1} parent=1 // pred_check
      _
    $region3: #{tpu_custom_call.1} parent=1 // pred_check_branch
      %12 = sbr.rel (0) target = $region5
    $region4: #{tpu_custom_call.1} parent=1 // pred_region
      %s14 = ssub.s32 256, 256
      %15 = vsyncadd [#allocation3], %s14
      %s16 = sshll.u32 [#allocation2], 4
      %s17 = int_to_ptr.vmem [resolvable:$true] %s16
      %22 = dma.hbm_to_vmem [thread:$0]  %s0, 256, %s17, [#allocation3], 128, 128, 8
    $region5: #{tpu_custom_call.1} parent=1 // pred_fallthru
      _
    // Predicated region
    $region6: #{tpu_custom_call.1} parent=1 // pred_check
      _
    $region7: #{tpu_custom_call.1} parent=1 // pred_check_branch
      %24 = sbr.rel (0) target = $region9
    $region8: #{tpu_custom_call.1} parent=1 // pred_region
      %s26 = ssub.s32 256, 256
      %27 = vsyncadd [#allocation6], %s26
      %s28 = sshll.u32 [#allocation5], 4
      %s29 = int_to_ptr.vmem [resolvable:$true] %s28
      %34 = dma.hbm_to_vmem [thread:$0]  %s1, 256, %s29, [#allocation6], 128, 128, 8
    $region9: #{tpu_custom_call.1} parent=1 // pred_fallthru
      _
    // Predicated region
    $region10: #{tpu_custom_call.1} parent=1 // pred_check
      _
    $region11: #{tpu_custom_call.1} parent=1 // pred_check_branch
      %36 = sbr.rel (0) target = $region13
    $region12: #{tpu_custom_call.1} parent=1 // pred_region
      %s38 = ssub.s32 16, 16
      %39 = vsyncadd [#allocation6], %s38
      %s41 = sshll.u32 [#allocation7], 4
      %s42 = int_to_ptr.vmem [resolvable:$true] %s41
      %44 = dma.hbm_to_vmem [thread:$0]  %s2, 16, %s42, [#allocation6]
    $region13: #{tpu_custom_call.1} parent=1 // pred_fallthru
      _
    // Predicated region
    $region14: #{tpu_custom_call.1} parent=1 // pred_check
      _
    $region15: #{tpu_custom_call.1} parent=1 // pred_check_branch
      %46 = sbr.rel (0) target = $region17
    $region16: #{tpu_custom_call.1} parent=1 // pred_region
      %47 = dma.done [#allocation3], 256
    $region17: #{tpu_custom_call.1} parent=1 // pred_fallthru
      _
    // Predicated region
    $region18: #{tpu_custom_call.1} parent=1 // pred_check
      _
    $region19: #{tpu_custom_call.1} parent=1 // pred_check_branch
      %49 = sbr.rel (0) target = $region21
    $region20: #{tpu_custom_call.1} parent=1 // pred_region
      %50 = dma.done [#allocation6], 256
    $region21: #{tpu_custom_call.1} parent=1 // pred_fallthru
      _
    // Predicated region
    $region22: #{tpu_custom_call.1} parent=1 // pred_check
      _
    $region23: #{tpu_custom_call.1} parent=1 // pred_check_branch
      %52 = sbr.rel (0) target = $region25
    $region24: #{tpu_custom_call.1} parent=1 // pred_region
      %53 = dma.done [#allocation6], 16
    $region25: #{tpu_custom_call.1} parent=1 // pred_fallthru
      _
    %v54 = vld [vmem:[#allocation2] sm:$0xff]
    %v55 = vld [vmem:[#allocation2 + $0x8] sm:$0xff]
    %v56 = vld [vmem:[#allocation5] sm:$0xff]
    %v57 = vld [vmem:[#allocation5 + $0x8] sm:$0xff]
    %v58 = vld [vmem:[#allocation7] sm:$0x1]
    %v60 = vlaneseq
    %v61 = vshrl.u32 %v60, 7
    %v62 = vsub.s32 0, %v61
    %v63 = vrot.slane %v58, %v62
    %vm65 = vcmask 130048
    %v67 = vsel %vm65, %v54, 0
    %v70 = vsel %vm65, %v55, 0
    %72 = vmatprep.subr.mxu0 0.0
    %73 = vmatpush1.msra.mxu0 %v56
    %74 = vmatprep.subr.mxu0 0.0
    %75 = vmatpush1.msra.mxu0 %v57
    %76 = vmatprep.subr.mxu0 0.0
    %77 = vmatpush1.msra.mxu0 0.0
    %78 = vmatprep.subr.mxu0 0.0
    %79 = vmatpush1.msra.mxu0 0.0
    %80 = vmatprep.subr.mxu0 0.0
    %81 = vmatpush1.msra.mxu0 0.0
    %82 = vmatprep.subr.mxu0 0.0
    %83 = vmatpush1.msra.mxu0 0.0
    %84 = vmatprep.subr.mxu0 0.0
    %85 = vmatpush1.msra.mxu0 0.0
    %86 = vmatprep.subr.mxu0 0.0
    %87 = vmatpush1.msra.mxu0 0.0
    %88 = vmatprep.subr.mxu0 0.0
    %89 = vmatpush1.msra.mxu0 0.0
    %90 = vmatprep.subr.mxu0 0.0
    %91 = vmatpush1.msra.mxu0 0.0
    %92 = vmatprep.subr.mxu0 0.0
    %93 = vmatpush1.msra.mxu0 0.0
    %94 = vmatprep.subr.mxu0 0.0
    %95 = vmatpush1.msra.mxu0 0.0
    %96 = vmatprep.subr.mxu0 0.0
    %97 = vmatpush1.msra.mxu0 0.0
    %98 = vmatprep.subr.mxu0 0.0
    %99 = vmatpush1.msra.mxu0 0.0
    %100 = vmatprep.subr.mxu0 0.0
    %101 = vmatpush1.msra.mxu0 0.0
    %102 = vmatprep.subr.mxu0 0.0
    %103 = vmatpush1.msra.mxu0 0.0
    %104 = vmatprep.subr.mxu0 0.0
    %105 = vmatpush1.msra.mxu0 0.0
    %106 = vmatprep.subr.mxu0 0.0
    %107 = vmatpush1.msra.mxu0 0.0
    %108 = vmatprep.subr.mxu0 0.0
    %109 = vmatpush1.msra.mxu0 0.0
    %110 = vmatprep.subr.mxu0 0.0
    %111 = vmatpush1.msra.mxu0 0.0
    %112 = vmatprep.subr.mxu0 0.0
    %113 = vmatpush1.msra.mxu0 0.0
    %114 = vmatprep.subr.mxu0 0.0
    %115 = vmatpush1.msra.mxu0 0.0
    %116 = vmatprep.subr.mxu0 0.0
    %117 = vmatpush1.msra.mxu0 0.0
    %118 = vmatprep.subr.mxu0 0.0
    %119 = vmatpush1.msra.mxu0 0.0
    %120 = vmatprep.subr.mxu0 0.0
    %121 = vmatpush1.msra.mxu0 0.0
    %122 = vmatprep.subr.mxu0 0.0
    %123 = vmatpush1.msra.mxu0 0.0
    %124 = vmatprep.subr.mxu0 0.0
    %125 = vmatpush1.msra.mxu0 0.0
    %126 = vmatprep.subr.mxu0 0.0
    %127 = vmatpush1.msra.mxu0 0.0
    %128 = vmatprep.subr.mxu0 0.0
    %129 = vmatpush1.msra.mxu0 0.0
    %130 = vmatprep.subr.mxu0 0.0
    %131 = vmatpush1.msra.mxu0 0.0
    %132 = vmatprep.subr.mxu0 0.0
    %133 = vmatpush1.msra.mxu0 0.0
    %134 = vmatprep.subr.mxu0 0.0
    %135 = vmatpush1.msra.mxu0 0.0
    %136 = vmatprep.mubr.f32.mxu0 0.0
    %137 = vmatmul.mubr.f32.gmra.mrb[0].mxu0 %v67
    %v138 = vpop.f32.mrb[0].mxu0
    %v139 = vadd.f32 %v63, %v138
    %v140 = vpop.f32.mrb[0].mxu0
    %141 = vmatprep.mubr.f32.mxu0 0.0
    %142 = vmatmul.mubr.f32.gmra.mrb[0].mxu0 %v70
    %v143 = vpop.f32.mrb[0].mxu0
    %v144 = vadd.f32 %v63, %v143
    %v145 = vpop.f32.mrb[0].mxu0
    %146 = vdwg.mxu0
    %vm147 = vcmask 523264
    %148 = vst.msk [vmem:[#allocation8] sm:$0xff] %vm147, %v139
    %149 = vst.msk [vmem:[#allocation8 + $0x8] sm:$0xff] %vm147, %v144
    // Predicated region
    $region26: #{tpu_custom_call.1} parent=1 // pred_check
      _
    $region27: #{tpu_custom_call.1} parent=1 // pred_check_branch
      %151 = sbr.rel (0) target = $region29
    $region28: #{tpu_custom_call.1} parent=1 // pred_region
      %s153 = ssub.s32 256, 256
      %154 = vsyncadd [#allocation4], %s153
      %s155 = sshll.u32 [#allocation8], 4
      %s156 = int_to_ptr.vmem [resolvable:$true] %s155
      %161 = dma.vmem_to_hbm [thread:$0]  %s156, 256, %s3, [#allocation4], 128, 128, 8
    $region29: #{tpu_custom_call.1} parent=1 // pred_fallthru
      _
    // Predicated region
    $region30: #{tpu_custom_call.1} parent=1 // pred_check
      _
    $region31: #{tpu_custom_call.1} parent=1 // pred_check_branch
      %163 = sbr.rel (0) target = $region33
    $region32: #{tpu_custom_call.1} parent=1 // pred_region
      %164 = dma.done [#allocation4], 256
    $region33: #{tpu_custom_call.1} parent=1 // pred_fallthru
      _
    %165 = vsyncpa [#allocation3], 1
    %166 = vsyncpa [#allocation6], 1
    %167 = vsyncpa [#allocation4], 1

</llo_original>
